<compile_context>
chip_gen: v5e
topology: v5e:2x2
jax: 0.10.0
libtpu: 0.0.40
codegen_flags: <defaults>
</compile_context>

<pallas_src>
import math

import jax
import jax.numpy as jnp
from jax import lax
from jax.experimental import pallas as pl
from jax.experimental.pallas import tpu as pltpu


# Contract dim 1 of lhs with dim 1 of rhs (i.e. x @ W.T without building W.T).
_CONTRACT_LAST = (((1,), (1,)), ((), ()))

_VMEM_BUDGET_BYTES = 24 * 1024 * 1024   # per-step budget; fits v7x's 32 MiB default scoped VMEM
_VMEM_LIMIT_BYTES = 32 * 1024 * 1024    # explicit scoped limit (<= 64 MiB v7x physical)


def _choose_grid(B, S, F, D):
    """Pick (grid size G, per-step batch BB) from the VMEM budget.

    Per-step footprint = double-buffered f32 inputs + double-buffered f32
    output + resident bf16 weights.  G starts at 2 when B >= 2 so the
    "parallel" grid axis keeps both v7x TensorCores busy; G grows (staying
    even) only if a step would not fit the budget.
    """
    weight_bytes = 3 * D * D * 2 + 3 * D * 4
    per_inst = 2 * ((S + F) * D * 4) + 2 * (S * D * 4)   # dbl-buffered in + out
    G = 2 if B >= 2 else 1
    while True:
        BB = -(-B // G)                                   # ceil(B / G)
        if BB == 1 or weight_bytes + BB * per_inst <= _VMEM_BUDGET_BYTES:
            return G, BB
        G += 2 if B >= 2 else 1


def _cross_attention_kernel(sent_ref, func_ref, wq_ref, bq_ref,
                            wk_ref, bk_ref, wv_ref, bv_ref, out_ref):
    BB, S, D = sent_ref.shape
    F = func_ref.shape[1]
    scale = 1.0 / math.sqrt(D)

    # Fold the per-step batch into rows so each projection is one wide MXU
    # matmul.  Inputs are f32 in VMEM, so this fold is layout-free (S and F are
    # multiples of the f32 sublane tile of 8); cast to bf16 just before the MXU.
    sent = sent_ref[...].reshape(BB * S, D).astype(jnp.bfloat16)
    func = func_ref[...].reshape(BB * F, D).astype(jnp.bfloat16)

    # nn.Linear: y = x @ W.T + b, contracting the in-features axis of W
    # directly (no transpose).  bf16 operands, f32 accumulation, f32 bias add.
    # K and V are separate matmuls: a second 32-deep MXU pass is nearly free,
    # whereas slicing a fused (.., 2D) output costs XLU lane work.
    q = lax.dot_general(sent, wq_ref[...], _CONTRACT_LAST,
                        preferred_element_type=jnp.float32) + bq_ref[...]
    k = lax.dot_general(func, wk_ref[...], _CONTRACT_LAST,
                        preferred_element_type=jnp.float32) + bk_ref[...]
    v = lax.dot_general(func, wv_ref[...], _CONTRACT_LAST,
                        preferred_element_type=jnp.float32) + bv_ref[...]

    q3 = q.reshape(BB, S, D)            # f32
    k3 = k.reshape(BB, F, D)            # f32
    v3 = v.reshape(BB, F, D)            # f32

    # Batched scores for all BB instances at once: contract D, batch over the
    # instance axis -> (BB, S, F).  Kept in f32 (operands are f32 accumulator
    # outputs; the contraction depth is only D, so multi-pass f32 MXU cost is
    # negligible and the softmax exponents stay accurate).
    z = scale * lax.dot_general(q3, k3, (((2,), (2,)), ((0,), (0,))),
                                preferred_element_type=jnp.float32)

    # One numerically-stable softmax over the function axis for all BB
    # instances (f32 VPU/EUP math — mandatory on v5e, no bf16 VPU/EUP there).
    # approx reciprocal is free (EUP slot) and its error is dwarfed by the
    # bf16 MXU operands that already set the tolerance.
    z_max = jnp.max(z, axis=-1, keepdims=True)
    e = jnp.exp(z - z_max)
    attn = e * pl.reciprocal(jnp.sum(e, axis=-1, keepdims=True), approx=True)

    # Batched context: contract F, batch over the instance axis -> (BB, S, D).
    # bf16 MXU operands, f32 accumulation.
    ctx = lax.dot_general(attn.astype(jnp.bfloat16), v3.astype(jnp.bfloat16),
                          (((2,), (1,)), ((0,), (0,))),
                          preferred_element_type=jnp.float32)

    # ReLU and direct (BB, S, D) block store — no lane concat, no wrapper-side
    # transpose pass.
    out_ref[...] = jnp.maximum(ctx, 0.0).astype(out_ref.dtype)


def cross_attention_block(func_embed, sent_embed, wq, bq, wk, bk, wv, bv):
    """CrossAttentionBlock forward.  Accepts the module's 2-D layout
    (sent (S, D), func (F, D)) or a batched (B, S, D) / (B, F, D) layout."""
    unbatched = sent_embed.ndim == 2
    if unbatched:
        sent_embed = sent_embed[None]
        func_embed = func_embed[None]

    B, S, D = sent_embed.shape
    F = func_embed.shape[1]

    G, BB = _choose_grid(B, S, F, D)
    B_pad = G * BB
    if B_pad != B:
        # Padded rows are all-zero; softmax of z=0 is uniform attention (no
        # NaN), and the rows are sliced off below — no masking needed.
        pad = B_pad - B
        sent_embed = jnp.pad(sent_embed, ((0, pad), (0, 0), (0, 0)))
        func_embed = jnp.pad(func_embed, ((0, pad), (0, 0), (0, 0)))

    sent_f32 = sent_embed.astype(jnp.float32)
    func_f32 = func_embed.astype(jnp.float32)
    wq_bf = wq.astype(jnp.bfloat16)
    wk_bf = wk.astype(jnp.bfloat16)
    wv_bf = wv.astype(jnp.bfloat16)
    bq_f = jnp.reshape(bq, (1, D)).astype(jnp.float32)
    bk_f = jnp.reshape(bk, (1, D)).astype(jnp.float32)
    bv_f = jnp.reshape(bv, (1, D)).astype(jnp.float32)

    # Advisory cost hint so XLA can schedule/overlap the surrounding pad/cast
    # ops around this tiny custom call.
    flops = 2 * B_pad * (S * D * D + 2 * F * D * D + 2 * S * F * D)
    bytes_accessed = (B_pad * (S + F) * D * 4        # f32 inputs
                      + 3 * D * D * 2 + 3 * D * 4    # bf16 weights + f32 biases
                      + B_pad * S * D * 4)           # f32 output
    cost = pl.CostEstimate(flops=flops,
                           transcendentals=B_pad * S * F,
                           bytes_accessed=bytes_accessed)

    out = pl.pallas_call(
        _cross_attention_kernel,
        out_shape=jax.ShapeDtypeStruct((B_pad, S, D), jnp.float32),
        grid=(G,),
        in_specs=[
            pl.BlockSpec((BB, S, D), lambda g: (g, 0, 0)),   # sent_embed
            pl.BlockSpec((BB, F, D), lambda g: (g, 0, 0)),   # func_embed
            pl.BlockSpec((D, D), lambda g: (0, 0)),          # W_q (resident)
            pl.BlockSpec((1, D), lambda g: (0, 0)),          # b_q
            pl.BlockSpec((D, D), lambda g: (0, 0)),          # W_k (resident)
            pl.BlockSpec((1, D), lambda g: (0, 0)),          # b_k
            pl.BlockSpec((D, D), lambda g: (0, 0)),          # W_v (resident)
            pl.BlockSpec((1, D), lambda g: (0, 0)),          # b_v
        ],
        out_specs=pl.BlockSpec((BB, S, D), lambda g: (g, 0, 0)),
        compiler_params=pltpu.CompilerParams(
            dimension_semantics=("parallel",),               # megacore sharding
            vmem_limit_bytes=_VMEM_LIMIT_BYTES),
        cost_estimate=cost,
    )(sent_f32, func_f32, wq_bf, bq_f, wk_bf, bk_f, wv_bf, bv_f)

    out = out[:B]
    return out[0] if unbatched else out


def _reference(func_embed, sent_embed, wq, bq, wk, bk, wv, bv):
    D = sent_embed.shape[-1]
    q = sent_embed @ wq.T + bq
    k = func_embed @ wk.T + bk
    v = func_embed @ wv.T + bv
    z = (1.0 / math.sqrt(D)) * jnp.einsum('...sd,...fd->...sf', q, k)
    attn = jax.nn.softmax(z, axis=-1)
    return jax.nn.relu(jnp.einsum('...sf,...fd->...sd', attn, v))


if __name__ == "__main__":
    S, F, D = 8, 16, 32
    B = 8

    key = jax.random.PRNGKey(0)
    ks = jax.random.split(key, 8)

    sent_embed = jax.random.normal(ks[0], (B, S, D), dtype=jnp.float32)
    func_embed = jax.random.normal(ks[1], (B, F, D), dtype=jnp.float32)

    lim = 1.0 / math.sqrt(D)
    wq = jax.random.uniform(ks[2], (D, D), minval=-lim, maxval=lim, dtype=jnp.float32)
    wk = jax.random.uniform(ks[3], (D, D), minval=-lim, maxval=lim, dtype=jnp.float32)
    wv = jax.random.uniform(ks[4], (D, D), minval=-lim, maxval=lim, dtype=jnp.float32)
    bq = jax.random.uniform(ks[5], (1, D), minval=-lim, maxval=lim, dtype=jnp.float32)
    bk = jax.random.uniform(ks[6], (1, D), minval=-lim, maxval=lim, dtype=jnp.float32)
    bv = jax.random.uniform(ks[7], (1, D), minval=-lim, maxval=lim, dtype=jnp.float32)

    # Tolerance is 1e-2 because the projection and attn@V matmuls run with
    # bf16 MXU operands (f32 accumulation); all softmax math stays f32.
    ATOL = RTOL = 1e-2

    # Batched path: G=2 parallel grid steps of BB=4 instances each.
    out = cross_attention_block(func_embed, sent_embed, wq, bq, wk, bk, wv, bv)
    out = jax.block_until_ready(out)
    ref = _reference(func_embed, sent_embed, wq, bq, wk, bk, wv, bv)
    assert out.shape == (B, S, D)
    assert jnp.allclose(out, ref, atol=ATOL, rtol=RTOL), "batched output mismatch"

    # Unbatched path, matching the original module's 2-D forward exactly.
    out1 = cross_attention_block(func_embed[0], sent_embed[0], wq, bq, wk, bk, wv, bv)
    out1 = jax.block_until_ready(out1)
    ref1 = _reference(func_embed[0], sent_embed[0], wq, bq, wk, bk, wv, bv)
    assert out1.shape == (S, D)
    assert jnp.allclose(out1, ref1, atol=ATOL, rtol=RTOL), "unbatched output mismatch"

    print("KERNEL_OK")
</pallas_src>

<mosaic_0001>
module attributes {stable_mosaic.version = 11 : i64} {
  func.func @_cross_attention_kernel(%arg0: i32, %arg1: memref<4x8x32xf32, #tpu.memory_space<vmem>>, %arg2: memref<4x16x32xf32, #tpu.memory_space<vmem>>, %arg3: memref<32x32xbf16, #tpu.memory_space<vmem>>, %arg4: memref<1x32xf32, #tpu.memory_space<vmem>>, %arg5: memref<32x32xbf16, #tpu.memory_space<vmem>>, %arg6: memref<1x32xf32, #tpu.memory_space<vmem>>, %arg7: memref<32x32xbf16, #tpu.memory_space<vmem>>, %arg8: memref<1x32xf32, #tpu.memory_space<vmem>>, %arg9: memref<4x8x32xf32, #tpu.memory_space<vmem>>) attributes {dimension_semantics = [#tpu.dimension_semantics<parallel>], iteration_bounds = array<i64: 2>, scalar_prefetch = 0 : i64, scratch_operands = 0 : i64, tpu.core_type = #tpu.core_type<tc>, window_params = [{transform_indices = @transform_0, window_bounds = array<i64: 4, 8, 32>}, {transform_indices = @transform_1, window_bounds = array<i64: 4, 16, 32>}, {pipeline_mode = #tpu.pipeline_mode<synchronous>, transform_indices = @transform_2, window_bounds = array<i64: 32, 32>}, {pipeline_mode = #tpu.pipeline_mode<synchronous>, transform_indices = @transform_3, window_bounds = array<i64: 1, 32>}, {pipeline_mode = #tpu.pipeline_mode<synchronous>, transform_indices = @transform_4, window_bounds = array<i64: 32, 32>}, {pipeline_mode = #tpu.pipeline_mode<synchronous>, transform_indices = @transform_5, window_bounds = array<i64: 1, 32>}, {pipeline_mode = #tpu.pipeline_mode<synchronous>, transform_indices = @transform_6, window_bounds = array<i64: 32, 32>}, {pipeline_mode = #tpu.pipeline_mode<synchronous>, transform_indices = @transform_7, window_bounds = array<i64: 1, 32>}, {transform_indices = @transform_8, window_bounds = array<i64: 4, 8, 32>}]} {
    %c0 = arith.constant 0 : index
    %c0_0 = arith.constant 0 : index
    %c0_1 = arith.constant 0 : index
    %0 = vector.load %arg1[%c0, %c0_0, %c0_1] : memref<4x8x32xf32, #tpu.memory_space<vmem>>, vector<4x8x32xf32>
    %1 = vector.shape_cast %0 : vector<4x8x32xf32> to vector<32x32xf32>
    %2 = arith.truncf %1 : vector<32x32xf32> to vector<32x32xbf16>
    %c0_2 = arith.constant 0 : index
    %c0_3 = arith.constant 0 : index
    %c0_4 = arith.constant 0 : index
    %3 = vector.load %arg2[%c0_2, %c0_3, %c0_4] : memref<4x16x32xf32, #tpu.memory_space<vmem>>, vector<4x16x32xf32>
    %4 = vector.shape_cast %3 : vector<4x16x32xf32> to vector<64x32xf32>
    %5 = arith.truncf %4 : vector<64x32xf32> to vector<64x32xbf16>
    %c0_5 = arith.constant 0 : index
    %c0_6 = arith.constant 0 : index
    %6 = vector.load %arg3[%c0_5, %c0_6] : memref<32x32xbf16, #tpu.memory_space<vmem>>, vector<32x32xbf16>
    %cst = arith.constant dense<0.000000e+00> : vector<32x32xf32>
    %7 = tpu.matmul %2, %6, %cst {dimension_numbers = #tpu.dot_dimension_numbers<[1], [1], [0], [0], [0, 0, 1, 0], [], []>} : vector<32x32xbf16>, vector<32x32xbf16>, vector<32x32xf32> -> vector<32x32xf32>
    %c0_7 = arith.constant 0 : index
    %c0_8 = arith.constant 0 : index
    %8 = vector.load %arg4[%c0_7, %c0_8] : memref<1x32xf32, #tpu.memory_space<vmem>>, vector<1x32xf32>
    %9 = vector.broadcast %8 : vector<1x32xf32> to vector<32x32xf32>
    %10 = arith.addf %7, %9 : vector<32x32xf32>
    %c0_9 = arith.constant 0 : index
    %c0_10 = arith.constant 0 : index
    %11 = vector.load %arg5[%c0_9, %c0_10] : memref<32x32xbf16, #tpu.memory_space<vmem>>, vector<32x32xbf16>
    %cst_11 = arith.constant dense<0.000000e+00> : vector<64x32xf32>
    %12 = tpu.matmul %5, %11, %cst_11 {dimension_numbers = #tpu.dot_dimension_numbers<[1], [1], [0], [0], [0, 0, 1, 0], [], []>} : vector<64x32xbf16>, vector<32x32xbf16>, vector<64x32xf32> -> vector<64x32xf32>
    %c0_12 = arith.constant 0 : index
    %c0_13 = arith.constant 0 : index
    %13 = vector.load %arg6[%c0_12, %c0_13] : memref<1x32xf32, #tpu.memory_space<vmem>>, vector<1x32xf32>
    %14 = vector.broadcast %13 : vector<1x32xf32> to vector<64x32xf32>
    %15 = arith.addf %12, %14 : vector<64x32xf32>
    %c0_14 = arith.constant 0 : index
    %c0_15 = arith.constant 0 : index
    %16 = vector.load %arg7[%c0_14, %c0_15] : memref<32x32xbf16, #tpu.memory_space<vmem>>, vector<32x32xbf16>
    %cst_16 = arith.constant dense<0.000000e+00> : vector<64x32xf32>
    %17 = tpu.matmul %5, %16, %cst_16 {dimension_numbers = #tpu.dot_dimension_numbers<[1], [1], [0], [0], [0, 0, 1, 0], [], []>} : vector<64x32xbf16>, vector<32x32xbf16>, vector<64x32xf32> -> vector<64x32xf32>
    %c0_17 = arith.constant 0 : index
    %c0_18 = arith.constant 0 : index
    %18 = vector.load %arg8[%c0_17, %c0_18] : memref<1x32xf32, #tpu.memory_space<vmem>>, vector<1x32xf32>
    %19 = vector.broadcast %18 : vector<1x32xf32> to vector<64x32xf32>
    %20 = arith.addf %17, %19 : vector<64x32xf32>
    %21 = vector.shape_cast %10 : vector<32x32xf32> to vector<4x8x32xf32>
    %22 = vector.shape_cast %15 : vector<64x32xf32> to vector<4x16x32xf32>
    %23 = vector.shape_cast %20 : vector<64x32xf32> to vector<4x16x32xf32>
    %cst_19 = arith.constant dense<0.000000e+00> : vector<4x8x16xf32>
    %24 = tpu.matmul %21, %22, %cst_19 {dimension_numbers = #tpu.dot_dimension_numbers<[2], [2], [1], [1], [0, 0, 0, 1, 1, 1], [0], [0]>} : vector<4x8x32xf32>, vector<4x16x32xf32>, vector<4x8x16xf32> -> vector<4x8x16xf32>
    %cst_20 = arith.constant 0.176776692 : f32
    %25 = vector.broadcast %cst_20 : f32 to vector<4x8x16xf32>
    %26 = arith.mulf %25, %24 : vector<4x8x16xf32>
    %cst_21 = arith.constant dense<0xFF800000> : vector<4x8xf32>
    %27 = vector.multi_reduction <maximumf>, %26, %cst_21 [2] : vector<4x8x16xf32> to vector<4x8xf32>
    %28 = vector.shape_cast %27 : vector<4x8xf32> to vector<4x8x1xf32>
    %29 = vector.broadcast %28 : vector<4x8x1xf32> to vector<4x8x16xf32>
    %30 = arith.subf %26, %29 : vector<4x8x16xf32>
    %31 = math.exp %30 : vector<4x8x16xf32>
    %cst_22 = arith.constant dense<0.000000e+00> : vector<4x8xf32>
    %32 = vector.multi_reduction <add>, %31, %cst_22 [2] : vector<4x8x16xf32> to vector<4x8xf32>
    %33 = vector.shape_cast %32 : vector<4x8xf32> to vector<4x8x1xf32>
    %34 = tpu.reciprocal %33 {approx = true} : vector<4x8x1xf32> -> vector<4x8x1xf32>
    %35 = vector.broadcast %34 : vector<4x8x1xf32> to vector<4x8x16xf32>
    %36 = arith.mulf %31, %35 : vector<4x8x16xf32>
    %37 = arith.truncf %36 : vector<4x8x16xf32> to vector<4x8x16xbf16>
    %38 = arith.truncf %23 : vector<4x16x32xf32> to vector<4x16x32xbf16>
    %cst_23 = arith.constant dense<0.000000e+00> : vector<4x8x32xf32>
    %39 = tpu.matmul %37, %38, %cst_23 {dimension_numbers = #tpu.dot_dimension_numbers<[2], [1], [1], [2], [0, 0, 0, 1, 1, 2], [0], [0]>} : vector<4x8x16xbf16>, vector<4x16x32xbf16>, vector<4x8x32xf32> -> vector<4x8x32xf32>
    %cst_24 = arith.constant 0.000000e+00 : f32
    %40 = vector.broadcast %cst_24 : f32 to vector<4x8x32xf32>
    %41 = arith.maximumf %39, %40 : vector<4x8x32xf32>
    %c0_25 = arith.constant 0 : index
    %c0_26 = arith.constant 0 : index
    %c0_27 = arith.constant 0 : index
    %42 = vector.load %arg9[%c0_25, %c0_26, %c0_27] : memref<4x8x32xf32, #tpu.memory_space<vmem>>, vector<4x8x32xf32>
    tpu.vector_store %arg9[%c0_25, %c0_26, %c0_27], %41 {strides = array<i32>} : memref<4x8x32xf32, #tpu.memory_space<vmem>>, vector<4x8x32xf32>,
    return
  }
  func.func @transform_0(%arg0: i32) -> (i32, i32, i32) {
    %c0_i32 = arith.constant 0 : i32
    %c0_i32_0 = arith.constant 0 : i32
    %c0_i32_1 = arith.constant 0 : i32
    return %arg0, %c0_i32, %c0_i32_0 : i32, i32, i32
  }
  func.func @transform_1(%arg0: i32) -> (i32, i32, i32) {
    %c0_i32 = arith.constant 0 : i32
    %c0_i32_0 = arith.constant 0 : i32
    %c0_i32_1 = arith.constant 0 : i32
    return %arg0, %c0_i32, %c0_i32_0 : i32, i32, i32
  }
  func.func @transform_2(%arg0: i32) -> (i32, i32) {
    %c0_i32 = arith.constant 0 : i32
    %c0_i32_0 = arith.constant 0 : i32
    %c0_i32_1 = arith.constant 0 : i32
    return %c0_i32, %c0_i32_0 : i32, i32
  }
  func.func @transform_3(%arg0: i32) -> (i32, i32) {
    %c0_i32 = arith.constant 0 : i32
    %c0_i32_0 = arith.constant 0 : i32
    %c0_i32_1 = arith.constant 0 : i32
    return %c0_i32, %c0_i32_0 : i32, i32
  }
  func.func @transform_4(%arg0: i32) -> (i32, i32) {
    %c0_i32 = arith.constant 0 : i32
    %c0_i32_0 = arith.constant 0 : i32
    %c0_i32_1 = arith.constant 0 : i32
    return %c0_i32, %c0_i32_0 : i32, i32
  }
  func.func @transform_5(%arg0: i32) -> (i32, i32) {
    %c0_i32 = arith.constant 0 : i32
    %c0_i32_0 = arith.constant 0 : i32
    %c0_i32_1 = arith.constant 0 : i32
    return %c0_i32, %c0_i32_0 : i32, i32
  }
  func.func @transform_6(%arg0: i32) -> (i32, i32) {
    %c0_i32 = arith.constant 0 : i32
    %c0_i32_0 = arith.constant 0 : i32
    %c0_i32_1 = arith.constant 0 : i32
    return %c0_i32, %c0_i32_0 : i32, i32
  }
  func.func @transform_7(%arg0: i32) -> (i32, i32) {
    %c0_i32 = arith.constant 0 : i32
    %c0_i32_0 = arith.constant 0 : i32
    %c0_i32_1 = arith.constant 0 : i32
    return %c0_i32, %c0_i32_0 : i32, i32
  }
  func.func @transform_8(%arg0: i32) -> (i32, i32, i32) {
    %c0_i32 = arith.constant 0 : i32
    %c0_i32_0 = arith.constant 0 : i32
    %c0_i32_1 = arith.constant 0 : i32
    return %arg0, %c0_i32, %c0_i32_0 : i32, i32, i32
  }
}

</mosaic_0001>

<llo_original>
// kernel: tpu_custom_call.1
$region0: #{tpu_custom_call.1}
  #allocation0 [shape = 'u32[]', space=smem, size = 0x4, offset = 0x4, fixed_abs, tag = 'smem constant byte address 0x4 - core index']
  #allocation1 [shape = 'u32[72,128]{1,0:T(1,128)}', space=vmem, size = 0x9000, scoped, tag = 'internal scratch']
  %s0 = inlined_call_operand.hbm [shape: f32[8,8,32], index: 0, kind: input, shape index: {}]
  %s1 = inlined_call_operand.hbm [shape: f32[8,16,32], index: 1, kind: input, shape index: {}]
  %s2 = inlined_call_operand.hbm [shape: bf16[32,32], index: 2, kind: input, shape index: {}]
  %s3 = inlined_call_operand.vmem [shape: f32[1,32], index: 3, kind: input, shape index: {}]
  %s4 = inlined_call_operand.hbm [shape: bf16[32,32], index: 4, kind: input, shape index: {}]
  %s5 = inlined_call_operand.vmem [shape: f32[1,32], index: 5, kind: input, shape index: {}]
  %s6 = inlined_call_operand.hbm [shape: bf16[32,32], index: 6, kind: input, shape index: {}]
  %s7 = inlined_call_operand.vmem [shape: f32[1,32], index: 7, kind: input, shape index: {}]
  %s8 = inlined_call_operand.hbm [shape: f32[8,8,32], index: 8, kind: output, shape index: {}]
  %s9 = sld [smem:[#allocation0]]
  $region85: #{tpu_custom_call.1} parent=0
    _
  %s11 = ssub.s32 1, %s9
  %s12 = scalar_select 0, %s11, %s9
  $region1: #{tpu_custom_call.1} parent=0
    #allocation2 [shape = 'u8[32768]{0}', space=vmem, size = 0x8000, scoped, tag = 'input window, operand 0']
    #allocation3 [shape = 's32[2]{0}', space=sflag, size = 0x8, scoped, tag = 'scoped memory for tpu_custom_call.1']
    #allocation4 [shape = 's32[2]{0}', space=sflag, size = 0x8, scoped, tag = 'scoped memory for tpu_custom_call.1']
    #allocation5 [shape = 'u8[65536]{0}', space=vmem, size = 0x10000, scoped, tag = 'input window, operand 1']
    #allocation6 [shape = 's32[2]{0}', space=sflag, size = 0x8, scoped, tag = 'scoped memory for tpu_custom_call.1']
    #allocation7 [shape = 'u8[8192]{0}', space=vmem, size = 0x2000, scoped, tag = 'input window, operand 2, single buffered']
    #allocation8 [shape = 'u8[8192]{0}', space=vmem, size = 0x2000, scoped, tag = 'input window, operand 4, single buffered']
    #allocation9 [shape = 's32[1]{0}', space=sflag, size = 0x4, scoped, tag = 'scoped memory for tpu_custom_call.1']
    #allocation10 [shape = 'u8[8192]{0}', space=vmem, size = 0x2000, scoped, tag = 'input window, operand 6, single buffered']
    #allocation11 [shape = 'u8[32768]{0}', space=vmem, size = 0x8000, scoped, tag = 'output window, operand 0']
    %13 = vsyncpa [#allocation3], 0
    %s14 = scalar_lea.sflag [#allocation3], 1
    %15 = vsyncpa %s14, 0
    %16 = vsyncpa [#allocation6], 0
    %s17 = scalar_lea.sflag [#allocation6], 1
    %18 = vsyncpa %s17, 0
    %19 = vsyncpa [#allocation9], 0
    %20 = vsyncpa [#allocation4], 0
    %s21 = scalar_lea.sflag [#allocation4], 1
    %22 = vsyncpa %s21, 0
    loop: start=0, step=1, limit=4
    $region2: #{tpu_custom_call.1} parent=1 // loop_pre_header
      _
    $region3: #{tpu_custom_call.1} parent=1 // loop_header
      %s24 = sphi 0, %s28
      %p25 = scmp.ge.s32.totalorder %s24, 4
      %s34 = sphi 0, %s36
      %s37 = sphi 0, %s34
      %s38 = sphi 0, %s37
      %s54 = sphi 0, %s38
      %s60 = sphi 0, %s62
      %s63 = sphi 0, %s60
      %s64 = sphi 0, %s63
      %s80 = sphi 0, %s64
      %s84 = sphi 0, %s84
      %s86 = sphi 0, %s84
      %s87 = sphi 0, %s86
      %s101 = sphi 0, %s87
      %s105 = sphi 0, %s105
      %s107 = sphi 0, %s105
      %s108 = sphi 0, %s107
      %s122 = sphi 0, %s108
      %s126 = sphi 0, %s126
      %s128 = sphi 0, %s126
      %s129 = sphi 0, %s128
      %s143 = sphi 0, %s129
      %s147 = sphi 0, %s147
      %s149 = sphi 0, %s147
      %s150 = sphi 0, %s149
      %s164 = sphi 0, %s150
      %s168 = sphi 0, %s168
      %s170 = sphi 0, %s168
      %s171 = sphi 0, %s170
      %s185 = sphi 0, %s171
      %s189 = sphi 0, %s189
      %s191 = sphi 0, %s189
      %s192 = sphi 0, %s191
      %s206 = sphi 0, %s192
      %s212 = sphi 0, %s214
      %s215 = sphi 0, %s212
      %s216 = sphi 0, %s215
      %s232 = sphi 0, %s216
    $region4: #{tpu_custom_call.1} parent=1 // loop_header_branch
      %27 = sbr.rel (%p25) target = $region8
    $region5: #{tpu_custom_call.1} parent=1 // loop_body
      %s29 = ssub.s32 %s24, 1
      %s30 = ssub.s32 %s24, 2
      %s31 = sadd.s32 %s24, 1
      %s32 = ssub.s32 %s24, %s31
      %p33 = scmp.eq.s32.totalorder %s32, 0
      %s35 = sadd.s32 %s34, 1
      %s36 = scalar_select %p33, %s34, %s35
      %p39 = pneg %p33
      %p40 = scmp.eq.s32.totalorder %s24, 1
      %p41 = por %p39, %p40
      %p42 = scmp.ne.s32.totalorder %s34, %s37
      %p43 = scmp.eq.s32.totalorder %s24, 0
      %p44 = por %p42, %p43
      %p45 = scmp.ne.s32.totalorder %s34, %s37
      %p46 = scmp.eq.s32.totalorder %s29, 1
      %p47 = por %p45, %p46
      %p48 = scmp.ne.s32.totalorder %s37, %s38
      %p49 = scmp.eq.s32.totalorder %s29, 0
      %p50 = por %p48, %p49
      %p51 = scmp.ne.s32.totalorder %s37, %s38
      %p52 = scmp.eq.s32.totalorder %s30, 1
      %p53 = por %p51, %p52
      %p55 = scmp.ne.s32.totalorder %s38, %s54
      %p56 = scmp.eq.s32.totalorder %s30, 0
      %p57 = por %p55, %p56
      %s58 = ssub.s32 %s24, %s31
      %p59 = scmp.eq.s32.totalorder %s58, 0
      %s61 = sadd.s32 %s60, 1
      %s62 = scalar_select %p59, %s60, %s61
      %p65 = pneg %p59
      %p66 = scmp.eq.s32.totalorder %s24, 1
      %p67 = por %p65, %p66
      %p68 = scmp.ne.s32.totalorder %s60, %s63
      %p69 = scmp.eq.s32.totalorder %s24, 0
      %p70 = por %p68, %p69
      %p71 = scmp.ne.s32.totalorder %s60, %s63
      %p72 = scmp.eq.s32.totalorder %s29, 1
      %p73 = por %p71, %p72
      %p74 = scmp.ne.s32.totalorder %s63, %s64
      %p75 = scmp.eq.s32.totalorder %s29, 0
      %p76 = por %p74, %p75
      %p77 = scmp.ne.s32.totalorder %s63, %s64
      %p78 = scmp.eq.s32.totalorder %s30, 1
      %p79 = por %p77, %p78
      %p81 = scmp.ne.s32.totalorder %s64, %s80
      %p82 = scmp.eq.s32.totalorder %s30, 0
      %p83 = por %p81, %p82
      %s85 = sadd.s32 %s84, 1
      %p88 = scmp.eq.s32.totalorder %s24, 1
      %p89 = scmp.ne.s32.totalorder %s84, %s86
      %p90 = scmp.eq.s32.totalorder %s24, 0
      %p91 = por %p89, %p90
      %p92 = scmp.ne.s32.totalorder %s84, %s86
      %p93 = scmp.eq.s32.totalorder %s29, 1
      %p94 = por %p92, %p93
      %p95 = scmp.ne.s32.totalorder %s86, %s87
      %p96 = scmp.eq.s32.totalorder %s29, 0
      %p97 = por %p95, %p96
      %p98 = scmp.ne.s32.totalorder %s86, %s87
      %p99 = scmp.eq.s32.totalorder %s30, 1
      %p100 = por %p98, %p99
      %p102 = scmp.ne.s32.totalorder %s87, %s101
      %p103 = scmp.eq.s32.totalorder %s30, 0
      %p104 = por %p102, %p103
      %s106 = sadd.s32 %s105, 1
      %p109 = scmp.eq.s32.totalorder %s24, 1
      %p110 = scmp.ne.s32.totalorder %s105, %s107
      %p111 = scmp.eq.s32.totalorder %s24, 0
      %p112 = por %p110, %p111
      %p113 = scmp.ne.s32.totalorder %s105, %s107
      %p114 = scmp.eq.s32.totalorder %s29, 1
      %p115 = por %p113, %p114
      %p116 = scmp.ne.s32.totalorder %s107, %s108
      %p117 = scmp.eq.s32.totalorder %s29, 0
      %p118 = por %p116, %p117
      %p119 = scmp.ne.s32.totalorder %s107, %s108
      %p120 = scmp.eq.s32.totalorder %s30, 1
      %p121 = por %p119, %p120
      %p123 = scmp.ne.s32.totalorder %s108, %s122
      %p124 = scmp.eq.s32.totalorder %s30, 0
      %p125 = por %p123, %p124
      %s127 = sadd.s32 %s126, 1
      %p130 = scmp.eq.s32.totalorder %s24, 1
      %p131 = scmp.ne.s32.totalorder %s126, %s128
      %p132 = scmp.eq.s32.totalorder %s24, 0
      %p133 = por %p131, %p132
      %p134 = scmp.ne.s32.totalorder %s126, %s128
      %p135 = scmp.eq.s32.totalorder %s29, 1
      %p136 = por %p134, %p135
      %p137 = scmp.ne.s32.totalorder %s128, %s129
      %p138 = scmp.eq.s32.totalorder %s29, 0
      %p139 = por %p137, %p138
      %p140 = scmp.ne.s32.totalorder %s128, %s129
      %p141 = scmp.eq.s32.totalorder %s30, 1
      %p142 = por %p140, %p141
      %p144 = scmp.ne.s32.totalorder %s129, %s143
      %p145 = scmp.eq.s32.totalorder %s30, 0
      %p146 = por %p144, %p145
      %s148 = sadd.s32 %s147, 1
      %p151 = scmp.eq.s32.totalorder %s24, 1
      %p152 = scmp.ne.s32.totalorder %s147, %s149
      %p153 = scmp.eq.s32.totalorder %s24, 0
      %p154 = por %p152, %p153
      %p155 = scmp.ne.s32.totalorder %s147, %s149
      %p156 = scmp.eq.s32.totalorder %s29, 1
      %p157 = por %p155, %p156
      %p158 = scmp.ne.s32.totalorder %s149, %s150
      %p159 = scmp.eq.s32.totalorder %s29, 0
      %p160 = por %p158, %p159
      %p161 = scmp.ne.s32.totalorder %s149, %s150
      %p162 = scmp.eq.s32.totalorder %s30, 1
      %p163 = por %p161, %p162
      %p165 = scmp.ne.s32.totalorder %s150, %s164
      %p166 = scmp.eq.s32.totalorder %s30, 0
      %p167 = por %p165, %p166
      %s169 = sadd.s32 %s168, 1
      %p172 = scmp.eq.s32.totalorder %s24, 1
      %p173 = scmp.ne.s32.totalorder %s168, %s170
      %p174 = scmp.eq.s32.totalorder %s24, 0
      %p175 = por %p173, %p174
      %p176 = scmp.ne.s32.totalorder %s168, %s170
      %p177 = scmp.eq.s32.totalorder %s29, 1
      %p178 = por %p176, %p177
      %p179 = scmp.ne.s32.totalorder %s170, %s171
      %p180 = scmp.eq.s32.totalorder %s29, 0
      %p181 = por %p179, %p180
      %p182 = scmp.ne.s32.totalorder %s170, %s171
      %p183 = scmp.eq.s32.totalorder %s30, 1
      %p184 = por %p182, %p183
      %p186 = scmp.ne.s32.totalorder %s171, %s185
      %p187 = scmp.eq.s32.totalorder %s30, 0
      %p188 = por %p186, %p187
      %s190 = sadd.s32 %s189, 1
      %p193 = scmp.eq.s32.totalorder %s24, 1
      %p194 = scmp.ne.s32.totalorder %s189, %s191
      %p195 = scmp.eq.s32.totalorder %s24, 0
      %p196 = por %p194, %p195
      %p197 = scmp.ne.s32.totalorder %s189, %s191
      %p198 = scmp.eq.s32.totalorder %s29, 1
      %p199 = por %p197, %p198
      %p200 = scmp.ne.s32.totalorder %s191, %s192
      %p201 = scmp.eq.s32.totalorder %s29, 0
      %p202 = por %p200, %p201
      %p203 = scmp.ne.s32.totalorder %s191, %s192
      %p204 = scmp.eq.s32.totalorder %s30, 1
      %p205 = por %p203, %p204
      %p207 = scmp.ne.s32.totalorder %s192, %s206
      %p208 = scmp.eq.s32.totalorder %s30, 0
      %p209 = por %p207, %p208
      %s210 = ssub.s32 %s24, %s31
      %p211 = scmp.eq.s32.totalorder %s210, 0
      %s213 = sadd.s32 %s212, 1
      %s214 = scalar_select %p211, %s212, %s213
      %p217 = pneg %p211
      %p218 = scmp.eq.s32.totalorder %s24, 1
      %p219 = por %p217, %p218
      %p220 = scmp.ne.s32.totalorder %s212, %s215
      %p221 = scmp.eq.s32.totalorder %s24, 0
      %p222 = por %p220, %p221
      %p223 = scmp.ne.s32.totalorder %s212, %s215
      %p224 = scmp.eq.s32.totalorder %s29, 1
      %p225 = por %p223, %p224
      %p226 = scmp.ne.s32.totalorder %s215, %s216
      %p227 = scmp.eq.s32.totalorder %s29, 0
      %p228 = por %p226, %p227
      %p229 = scmp.ne.s32.totalorder %s215, %s216
      %p230 = scmp.eq.s32.totalorder %s30, 1
      %p231 = por %p229, %p230
      %p233 = scmp.ne.s32.totalorder %s216, %s232
      %p234 = scmp.eq.s32.totalorder %s30, 0
      %p235 = por %p233, %p234
      %p236 = scmp.le.s32.totalorder 1, %s24
      %p237 = scmp.lt.s32.totalorder %s24, 3
      %p238 = pnand %p236, %p237
      %p239 = pneg %p238
      // Predicated region
      $region9: #{tpu_custom_call.1} parent=5 // pred_check
        _
      $region10: #{tpu_custom_call.1} parent=5 // pred_check_branch
        %241 = sbr.rel (%p238) target = $region12
      $region11: #{tpu_custom_call.1} parent=5 // pred_region
        %s242 = ssub.s32 %s24, 1
        // Predicated region
        $region13: #{tpu_custom_call.1} parent=11 // pred_check
          %p243 = pneg %p97
        $region14: #{tpu_custom_call.1} parent=11 // pred_check_branch
          %245 = sbr.rel (%p243) target = $region16
        $region15: #{tpu_custom_call.1} parent=11 // pred_region
          %247 = vsyncadd [#allocation6], 0
          %s248 = sshll.u32 %s2, 4
          %s249 = int_to_ptr.hbm [resolvable:$true] %s248
          %s250 = sshll.u32 [#allocation7], 4
          %s251 = int_to_ptr.vmem [resolvable:$true] %s250
          %256 = dma.hbm_to_vmem [thread:$0]  %s249, 256, %s251, [#allocation6], 64, 64, 4
        $region16: #{tpu_custom_call.1} parent=11 // pred_fallthru
          _
        // Predicated region
        $region17: #{tpu_custom_call.1} parent=11 // pred_check
          %p257 = pneg %p118
        $region18: #{tpu_custom_call.1} parent=11 // pred_check_branch
          %259 = sbr.rel (%p257) target = $region20
        $region19: #{tpu_custom_call.1} parent=11 // pred_region
          _
        $region20: #{tpu_custom_call.1} parent=11 // pred_fallthru
          _
        // Predicated region
        $region21: #{tpu_custom_call.1} parent=11 // pred_check
          %p260 = pneg %p139
        $region22: #{tpu_custom_call.1} parent=11 // pred_check_branch
          %262 = sbr.rel (%p260) target = $region24
        $region23: #{tpu_custom_call.1} parent=11 // pred_region
          %264 = vsyncadd [#allocation9], 0
          %s265 = sshll.u32 %s4, 4
          %s266 = int_to_ptr.hbm [resolvable:$true] %s265
          %s267 = sshll.u32 [#allocation8], 4
          %s268 = int_to_ptr.vmem [resolvable:$true] %s267
          %273 = dma.hbm_to_vmem [thread:$0]  %s266, 256, %s268, [#allocation9], 64, 64, 4
        $region24: #{tpu_custom_call.1} parent=11 // pred_fallthru
          _
        // Predicated region
        $region25: #{tpu_custom_call.1} parent=11 // pred_check
          %p274 = pneg %p160
        $region26: #{tpu_custom_call.1} parent=11 // pred_check_branch
          %276 = sbr.rel (%p274) target = $region28
        $region27: #{tpu_custom_call.1} parent=11 // pred_region
          _
        $region28: #{tpu_custom_call.1} parent=11 // pred_fallthru
          _
        // Predicated region
        $region29: #{tpu_custom_call.1} parent=11 // pred_check
          %p277 = pneg %p181
        $region30: #{tpu_custom_call.1} parent=11 // pred_check_branch
          %279 = sbr.rel (%p277) target = $region32
        $region31: #{tpu_custom_call.1} parent=11 // pred_region
          %281 = vsyncadd [#allocation9], 0
          %s282 = sshll.u32 %s6, 4
          %s283 = int_to_ptr.hbm [resolvable:$true] %s282
          %s284 = sshll.u32 [#allocation10], 4
          %s285 = int_to_ptr.vmem [resolvable:$true] %s284
          %290 = dma.hbm_to_vmem [thread:$0]  %s283, 256, %s285, [#allocation9], 64, 64, 4
        $region32: #{tpu_custom_call.1} parent=11 // pred_fallthru
          _
        // Predicated region
        $region33: #{tpu_custom_call.1} parent=11 // pred_check
          %p291 = pneg %p202
        $region34: #{tpu_custom_call.1} parent=11 // pred_check_branch
          %293 = sbr.rel (%p291) target = $region36
        $region35: #{tpu_custom_call.1} parent=11 // pred_region
          _
        $region36: #{tpu_custom_call.1} parent=11 // pred_fallthru
          _
      $region12: #{tpu_custom_call.1} parent=5 // pred_fallthru
        _
      %p294 = scmp.lt.s32.totalorder %s24, 2
      // Predicated region
      $region37: #{tpu_custom_call.1} parent=5 // pred_check
        %p295 = pneg %p294
      $region38: #{tpu_custom_call.1} parent=5 // pred_check_branch
        %297 = sbr.rel (%p295) target = $region40
      $region39: #{tpu_custom_call.1} parent=5 // pred_region
        // Predicated region
        $region41: #{tpu_custom_call.1} parent=39 // pred_check
          %p298 = pneg %p44
        $region42: #{tpu_custom_call.1} parent=39 // pred_check_branch
          %300 = sbr.rel (%p298) target = $region44
        $region43: #{tpu_custom_call.1} parent=39 // pred_region
          %s301 = sand.u32 %s34, 1
          %s302 = scalar_lea.sflag [#allocation3], %s301
          %s303 = sand.u32 %s34, 1
          %s304 = smul.addr %s303, 32
          %s305 = scalar_lea.vmem [#allocation2], %s304
          %s306 = smul.u32 4, %s24
          %308 = vsyncadd %s302, 0
          %s309 = smul.addr %s306, 8
          %s310 = scalar_lea.hbm %s0, %s309
          %s311 = sshll.u32 %s310, 4
          %s312 = int_to_ptr.hbm [resolvable:$true] %s311
          %s313 = sshll.u32 %s305, 4
          %s314 = int_to_ptr.vmem [resolvable:$true] %s313
          %319 = dma.hbm_to_vmem [thread:$0]  %s312, 512, %s314, %s302, 128, 128, 8
        $region44: #{tpu_custom_call.1} parent=39 // pred_fallthru
          _
        // Predicated region
        $region45: #{tpu_custom_call.1} parent=39 // pred_check
          %p320 = pneg %p70
        $region46: #{tpu_custom_call.1} parent=39 // pred_check_branch
          %322 = sbr.rel (%p320) target = $region48
        $region47: #{tpu_custom_call.1} parent=39 // pred_region
          %s323 = sand.u32 %s24, 1
          %s324 = scalar_lea.sflag [#allocation6], %s323
          %s325 = sand.u32 %s60, 1
          %s326 = smul.addr %s325, 64
          %s327 = scalar_lea.vmem [#allocation5], %s326
          %s328 = smul.u32 4, %s24
          %330 = vsyncadd %s324, 0
          %s331 = smul.addr %s328, 2
          %s332 = smul.addr %s331, 8
          %s333 = scalar_lea.hbm %s1, %s332
          %s334 = sshll.u32 %s333, 4
          %s335 = int_to_ptr.hbm [resolvable:$true] %s334
          %s336 = sshll.u32 %s327, 4
          %s337 = int_to_ptr.vmem [resolvable:$true] %s336
          %342 = dma.hbm_to_vmem [thread:$0]  %s335, 1024, %s337, %s324, 128, 128, 8
        $region48: #{tpu_custom_call.1} parent=39 // pred_fallthru
          _
      $region40: #{tpu_custom_call.1} parent=5 // pred_fallthru
        _
      %p343 = scmp.le.s32.totalorder 1, %s24
      %p344 = scmp.lt.s32.totalorder %s24, 3
      %p345 = pnand %p343, %p344
      %p346 = pneg %p345
      // Predicated region
      $region49: #{tpu_custom_call.1} parent=5 // pred_check
        _
      $region50: #{tpu_custom_call.1} parent=5 // pred_check_branch
        %348 = sbr.rel (%p345) target = $region52
      $region51: #{tpu_custom_call.1} parent=5 // pred_region
        %s349 = ssub.s32 %s24, 1
        %s350 = sand.u32 %s37, 1
        %s351 = scalar_lea.sflag [#allocation3], %s350
        %s352 = sand.u32 %s37, 1
        %s353 = smul.addr %s352, 32
        %s354 = scalar_lea.vmem [#allocation2], %s353
        // Predicated region
        $region53: #{tpu_custom_call.1} parent=51 // pred_check
          %p355 = pneg %p50
        $region54: #{tpu_custom_call.1} parent=51 // pred_check_branch
          %357 = sbr.rel (%p355) target = $region56
        $region55: #{tpu_custom_call.1} parent=51 // pred_region
          %359 = dma.done %s351, 512
        $region56: #{tpu_custom_call.1} parent=51 // pred_fallthru
          _
        %s360 = sand.u32 %s29, 1
        %s361 = scalar_lea.sflag [#allocation6], %s360
        %s362 = sand.u32 %s63, 1
        %s363 = smul.addr %s362, 64
        %s364 = scalar_lea.vmem [#allocation5], %s363
        // Predicated region
        $region57: #{tpu_custom_call.1} parent=51 // pred_check
          %p365 = pneg %p76
        $region58: #{tpu_custom_call.1} parent=51 // pred_check_branch
          %367 = sbr.rel (%p365) target = $region60
        $region59: #{tpu_custom_call.1} parent=51 // pred_region
          %369 = dma.done %s361, 1024
        $region60: #{tpu_custom_call.1} parent=51 // pred_fallthru
          _
        // Predicated region
        $region61: #{tpu_custom_call.1} parent=51 // pred_check
          %p370 = pneg %p97
        $region62: #{tpu_custom_call.1} parent=51 // pred_check_branch
          %372 = sbr.rel (%p370) target = $region64
        $region63: #{tpu_custom_call.1} parent=51 // pred_region
          %374 = dma.done [#allocation6], 256
        $region64: #{tpu_custom_call.1} parent=51 // pred_fallthru
          _
        // Predicated region
        $region65: #{tpu_custom_call.1} parent=51 // pred_check
          %p375 = pneg %p139
        $region66: #{tpu_custom_call.1} parent=51 // pred_check_branch
          %377 = sbr.rel (%p375) target = $region68
        $region67: #{tpu_custom_call.1} parent=51 // pred_region
          %379 = dma.done [#allocation9], 256
        $region68: #{tpu_custom_call.1} parent=51 // pred_fallthru
          _
        // Predicated region
        $region69: #{tpu_custom_call.1} parent=51 // pred_check
          %p380 = pneg %p181
        $region70: #{tpu_custom_call.1} parent=51 // pred_check_branch
          %382 = sbr.rel (%p380) target = $region72
        $region71: #{tpu_custom_call.1} parent=51 // pred_region
          %384 = dma.done [#allocation9], 256
        $region72: #{tpu_custom_call.1} parent=51 // pred_fallthru
          _
        %s385 = sand.u32 %s37, 1
        %s386 = scalar_lea.sflag [#allocation3], %s385
        %s387 = sand.u32 %s37, 1
        %s388 = smul.addr %s387, 32
        %s389 = scalar_lea.vmem [#allocation2], %s388
        %p390 = pneg %p50
        %p391 = pneg %p47
        %s392 = sand.u32 %s29, 1
        %s393 = scalar_lea.sflag [#allocation6], %s392
        %s394 = sand.u32 %s63, 1
        %s395 = smul.addr %s394, 64
        %s396 = scalar_lea.vmem [#allocation5], %s395
        %p397 = pneg %p76
        %p398 = pneg %p73
        %p399 = pneg %p97
        %p400 = pneg %p94
        %p401 = pneg %p118
        %p402 = pneg %p115
        %p403 = pneg %p139
        %p404 = pneg %p136
        %p405 = pneg %p160
        %p406 = pneg %p157
        %p407 = pneg %p181
        %p408 = pneg %p178
        %p409 = pneg %p202
        %p410 = pneg %p199
        %p411 = pneg %p228
        %p412 = pneg %p225
        %s413 = sand.u32 %s215, 1
        %s414 = scalar_lea.sflag [#allocation4], %s413
        %s415 = sand.u32 %s215, 1
        %s416 = smul.addr %s415, 32
        %s417 = scalar_lea.vmem [#allocation11], %s416
        %s418 = smul.u32 4, %s29
        %s419 = smul.u32 4, %s29
        %s420 = smul.u32 4, %s29
        %v422 = vld [vmem:[%s354] sm:$0xff]
        %v423 = vld [vmem:[%s354 + $0x8] sm:$0xff]
        %v424 = vld [vmem:[%s354 + $0x10] sm:$0xff]
        %v425 = vld [vmem:[%s354 + $0x18] sm:$0xff]
        %v426 = vpack.c.bf16 %v423, %v422
        %v427 = vpack.c.bf16 %v425, %v424
        %v428 = vld [vmem:[%s364] sm:$0xff]
        %v429 = vld [vmem:[%s364 + $0x8] sm:$0xff]
        %v430 = vld [vmem:[%s364 + $0x10] sm:$0xff]
        %v431 = vld [vmem:[%s364 + $0x18] sm:$0xff]
        %v432 = vld [vmem:[%s364 + $0x20] sm:$0xff]
        %v433 = vld [vmem:[%s364 + $0x28] sm:$0xff]
        %v434 = vld [vmem:[%s364 + $0x30] sm:$0xff]
        %v435 = vld [vmem:[%s364 + $0x38] sm:$0xff]
        %v436 = vpack.c.bf16 %v429, %v428
        %v437 = vpack.c.bf16 %v431, %v430
        %v438 = vpack.c.bf16 %v433, %v432
        %v439 = vpack.c.bf16 %v435, %v434
        %v440 = vld [vmem:[#allocation7] sm:$0xf]
        %v441 = vld [vmem:[#allocation7 + $0x4] sm:$0xf]
        %v442 = vld [vmem:[#allocation7 + $0x8] sm:$0xf]
        %v443 = vld [vmem:[#allocation7 + $0xc] sm:$0xf]
        %v444 = vld [vmem:[%s3] sm:$0x1]
        %v446 = vperm.slane %v444, 0
        %v452 = vunpack.c.l.b16 %v440
        %v453 = vunpack.c.l.b16 %v441
        %v454 = vunpack.c.l.b16 %v442
        %v455 = vunpack.c.l.b16 %v443
        %v456 = vpack.c.b16 %v453, %v452
        %v457 = vpack.c.b16 %v455, %v454
        %vm458 = vcmask 261120
        %v460 = vsel %vm458, %v426, 0
        %v463 = vsel %vm458, %v427, 0
        %v466 = vsel %vm458, %v456, 0
        %v469 = vsel %vm458, %v457, 0
        %471 = vmatpush.bf16.xpose.msra.mxu0 0
        %472 = vmatpush.bf16.xpose.msra.mxu0 0
        %473 = vmatpush.bf16.xpose.msra.mxu0 0
        %474 = vmatpush.bf16.xpose.msra.mxu0 0
        %475 = vmatpush.bf16.xpose.msra.mxu0 0
        %476 = vmatpush.bf16.xpose.msra.mxu0 0
        %477 = vmatpush.bf16.xpose.msra.mxu0 %v469
        %478 = vmatpush.bf16.xpose.msra.mxu0 %v466
        %479 = vmatmul.bf16.gmra.mxu0 %v460
        %v480 = vpop.f32.mrf.mxu0
        %v481 = vadd.f32 %v446, %v480
        %v482 = vpop.f32.mrf.mxu0
        %v483 = vadd.f32 %v446, %v482
        %484 = vmatmul.bf16.gmra.mxu0 %v463
        %v485 = vpop.f32.mrf.mxu0
        %v486 = vadd.f32 %v446, %v485
        %v487 = vpop.f32.mrf.mxu0
        %v488 = vadd.f32 %v446, %v487
        %489 = vdwg.mxu0
        %v490 = vld [vmem:[#allocation8] sm:$0xf]
        %v491 = vld [vmem:[#allocation8 + $0x4] sm:$0xf]
        %v492 = vld [vmem:[#allocation8 + $0x8] sm:$0xf]
        %v493 = vld [vmem:[#allocation8 + $0xc] sm:$0xf]
        %v494 = vld [vmem:[%s5] sm:$0x1]
        %v496 = vperm.slane %v494, 0
        %v502 = vunpack.c.l.b16 %v490
        %v503 = vunpack.c.l.b16 %v491
        %v504 = vunpack.c.l.b16 %v492
        %v505 = vunpack.c.l.b16 %v493
        %v506 = vpack.c.b16 %v503, %v502
        %v507 = vpack.c.b16 %v505, %v504
        %v509 = vsel %vm458, %v436, 0
        %v512 = vsel %vm458, %v437, 0
        %v515 = vsel %vm458, %v438, 0
        %v518 = vsel %vm458, %v439, 0
        %v521 = vsel %vm458, %v506, 0
        %v524 = vsel %vm458, %v507, 0
        %526 = vmatpush.bf16.xpose.msra.mxu0 0
        %527 = vmatpush.bf16.xpose.msra.mxu0 0
        %528 = vmatpush.bf16.xpose.msra.mxu0 0
        %529 = vmatpush.bf16.xpose.msra.mxu0 0
        %530 = vmatpush.bf16.xpose.msra.mxu0 0
        %531 = vmatpush.bf16.xpose.msra.mxu0 0
        %532 = vmatpush.bf16.xpose.msra.mxu0 %v524
        %533 = vmatpush.bf16.xpose.msra.mxu0 %v521
        %534 = vmatmul.bf16.gmra.mxu0 %v509
        %v535 = vpop.f32.mrf.mxu0
        %v536 = vadd.f32 %v496, %v535
        %v537 = vpop.f32.mrf.mxu0
        %v538 = vadd.f32 %v496, %v537
        %539 = vmatmul.bf16.gmra.mxu0 %v512
        %v540 = vpop.f32.mrf.mxu0
        %v541 = vadd.f32 %v496, %v540
        %v542 = vpop.f32.mrf.mxu0
        %v543 = vadd.f32 %v496, %v542
        %544 = vmatmul.bf16.gmra.mxu0 %v515
        %v545 = vpop.f32.mrf.mxu0
        %v546 = vadd.f32 %v496, %v545
        %v547 = vpop.f32.mrf.mxu0
        %v548 = vadd.f32 %v496, %v547
        %549 = vmatmul.bf16.gmra.mxu0 %v518
        %v550 = vpop.f32.mrf.mxu0
        %v551 = vadd.f32 %v496, %v550
        %v552 = vpop.f32.mrf.mxu0
        %v553 = vadd.f32 %v496, %v552
        %554 = vdwg.mxu0
        %v555 = vld [vmem:[#allocation10] sm:$0xf]
        %v556 = vld [vmem:[#allocation10 + $0x4] sm:$0xf]
        %v557 = vld [vmem:[#allocation10 + $0x8] sm:$0xf]
        %v558 = vld [vmem:[#allocation10 + $0xc] sm:$0xf]
        %v559 = vld [vmem:[%s7] sm:$0x1]
        %v561 = vperm.slane %v559, 0
        %v567 = vunpack.c.l.b16 %v555
        %v568 = vunpack.c.l.b16 %v556
        %v569 = vunpack.c.l.b16 %v557
        %v570 = vunpack.c.l.b16 %v558
        %v571 = vpack.c.b16 %v568, %v567
        %v572 = vpack.c.b16 %v570, %v569
        %v574 = vsel %vm458, %v571, 0
        %v577 = vsel %vm458, %v572, 0
        %579 = vmatpush.bf16.xpose.msra.mxu0 0
        %580 = vmatpush.bf16.xpose.msra.mxu0 0
        %581 = vmatpush.bf16.xpose.msra.mxu0 0
        %582 = vmatpush.bf16.xpose.msra.mxu0 0
        %583 = vmatpush.bf16.xpose.msra.mxu0 0
        %584 = vmatpush.bf16.xpose.msra.mxu0 0
        %585 = vmatpush.bf16.xpose.msra.mxu0 %v577
        %586 = vmatpush.bf16.xpose.msra.mxu0 %v574
        %587 = vmatmul.bf16.gmra.mxu0 %v509
        %v588 = vpop.f32.mrf.mxu0
        %v589 = vadd.f32 %v561, %v588
        %v590 = vpop.f32.mrf.mxu0
        %v591 = vadd.f32 %v561, %v590
        %592 = vmatmul.bf16.gmra.mxu0 %v512
        %v593 = vpop.f32.mrf.mxu0
        %v594 = vadd.f32 %v561, %v593
        %v595 = vpop.f32.mrf.mxu0
        %v596 = vadd.f32 %v561, %v595
        %597 = vmatmul.bf16.gmra.mxu0 %v515
        %v598 = vpop.f32.mrf.mxu0
        %v599 = vadd.f32 %v561, %v598
        %v600 = vpop.f32.mrf.mxu0
        %v601 = vadd.f32 %v561, %v600
        %602 = vmatmul.bf16.gmra.mxu0 %v518
        %v603 = vpop.f32.mrf.mxu0
        %v604 = vadd.f32 %v561, %v603
        %v605 = vpop.f32.mrf.mxu0
        %v606 = vadd.f32 %v561, %v605
        %607 = vdwg.mxu0
        %v609 = vsel %vm458, %v481, 0
        %v612 = vsel %vm458, %v536, 0
        %v615 = vsel %vm458, %v538, 0
        %617 = vmatpush.xpose.msra.mxu0 0.0
        %618 = vmatpush.xpose.msra.mxu0 0.0
        %619 = vmatpush.xpose.msra.mxu0 0.0
        %620 = vmatpush.xpose.msra.mxu0 0.0
        %621 = vmatpush.xpose.msra.mxu0 0.0
        %622 = vmatpush.xpose.msra.mxu0 0.0
        %623 = vmatpush.xpose.msra.mxu0 0.0
        %624 = vmatpush.xpose.msra.mxu0 0.0
        %625 = vmatpush.xpose.msra.mxu0 0.0
        %626 = vmatpush.xpose.msra.mxu0 0.0
        %627 = vmatpush.xpose.msra.mxu0 0.0
        %628 = vmatpush.xpose.msra.mxu0 0.0
        %629 = vmatpush.xpose.msra.mxu0 0.0
        %630 = vmatpush.xpose.msra.mxu0 0.0
        %631 = vmatpush.xpose.msra.mxu0 %v615
        %632 = vmatpush.xpose.msra.mxu0 %v612
        %633 = vmatmul.f32.gmra.mxu0 %v609
        %v634 = vpop.f32.mrf.mxu0
        %v635 = vadd.f32 0.0, %v634
        %636 = vdwg.mxu0
        %v638 = vsel %vm458, %v483, 0
        %v641 = vsel %vm458, %v541, 0
        %v644 = vsel %vm458, %v543, 0
        %646 = vmatpush.xpose.msra.mxu0 0.0
        %647 = vmatpush.xpose.msra.mxu0 0.0
        %648 = vmatpush.xpose.msra.mxu0 0.0
        %649 = vmatpush.xpose.msra.mxu0 0.0
        %650 = vmatpush.xpose.msra.mxu0 0.0
        %651 = vmatpush.xpose.msra.mxu0 0.0
        %652 = vmatpush.xpose.msra.mxu0 0.0
        %653 = vmatpush.xpose.msra.mxu0 0.0
        %654 = vmatpush.xpose.msra.mxu0 0.0
        %655 = vmatpush.xpose.msra.mxu0 0.0
        %656 = vmatpush.xpose.msra.mxu0 0.0
        %657 = vmatpush.xpose.msra.mxu0 0.0
        %658 = vmatpush.xpose.msra.mxu0 0.0
        %659 = vmatpush.xpose.msra.mxu0 0.0
        %660 = vmatpush.xpose.msra.mxu0 %v644
        %661 = vmatpush.xpose.msra.mxu0 %v641
        %662 = vmatmul.f32.gmra.mxu0 %v638
        %v663 = vpop.f32.mrf.mxu0
        %v664 = vadd.f32 0.0, %v663
        %665 = vdwg.mxu0
        %v667 = vsel %vm458, %v486, 0
        %v670 = vsel %vm458, %v546, 0
        %v673 = vsel %vm458, %v548, 0
        %675 = vmatpush.xpose.msra.mxu0 0.0
        %676 = vmatpush.xpose.msra.mxu0 0.0
        %677 = vmatpush.xpose.msra.mxu0 0.0
        %678 = vmatpush.xpose.msra.mxu0 0.0
        %679 = vmatpush.xpose.msra.mxu0 0.0
        %680 = vmatpush.xpose.msra.mxu0 0.0
        %681 = vmatpush.xpose.msra.mxu0 0.0
        %682 = vmatpush.xpose.msra.mxu0 0.0
        %683 = vmatpush.xpose.msra.mxu0 0.0
        %684 = vmatpush.xpose.msra.mxu0 0.0
        %685 = vmatpush.xpose.msra.mxu0 0.0
        %686 = vmatpush.xpose.msra.mxu0 0.0
        %687 = vmatpush.xpose.msra.mxu0 0.0
        %688 = vmatpush.xpose.msra.mxu0 0.0
        %689 = vmatpush.xpose.msra.mxu0 %v673
        %690 = vmatpush.xpose.msra.mxu0 %v670
        %691 = vmatmul.f32.gmra.mxu0 %v667
        %v692 = vpop.f32.mrf.mxu0
        %v693 = vadd.f32 0.0, %v692
        %694 = vdwg.mxu0
        %v696 = vsel %vm458, %v488, 0
        %v699 = vsel %vm458, %v551, 0
        %v702 = vsel %vm458, %v553, 0
        %704 = vmatpush.xpose.msra.mxu0 0.0
        %705 = vmatpush.xpose.msra.mxu0 0.0
        %706 = vmatpush.xpose.msra.mxu0 0.0
        %707 = vmatpush.xpose.msra.mxu0 0.0
        %708 = vmatpush.xpose.msra.mxu0 0.0
        %709 = vmatpush.xpose.msra.mxu0 0.0
        %710 = vmatpush.xpose.msra.mxu0 0.0
        %711 = vmatpush.xpose.msra.mxu0 0.0
        %712 = vmatpush.xpose.msra.mxu0 0.0
        %713 = vmatpush.xpose.msra.mxu0 0.0
        %714 = vmatpush.xpose.msra.mxu0 0.0
        %715 = vmatpush.xpose.msra.mxu0 0.0
        %716 = vmatpush.xpose.msra.mxu0 0.0
        %717 = vmatpush.xpose.msra.mxu0 0.0
        %718 = vmatpush.xpose.msra.mxu0 %v702
        %719 = vmatpush.xpose.msra.mxu0 %v699
        %720 = vmatmul.f32.gmra.mxu0 %v696
        %v721 = vpop.f32.mrf.mxu0
        %v722 = vadd.f32 0.0, %v721
        %723 = vdwg.mxu0
        %v724 = vmul.f32 %v635, 0.17677669
        %v725 = vmul.f32 %v664, 0.17677669
        %v726 = vmul.f32 %v693, 0.17677669
        %v727 = vmul.f32 %v722, 0.17677669
        %vm728 = vcmask 130048
        %v729 = vsel %vm728, %v724, -inf
        %730 = vmax.xlane.f32.xlu0 %v729
        %v731 = vpop.xlane.xlu0 %730
        %v732 = vsel %vm728, %v725, -inf
        %733 = vmax.xlane.f32.xlu0 %v732
        %v734 = vpop.xlane.xlu0 %733
        %v735 = vsel %vm728, %v726, -inf
        %736 = vmax.xlane.f32.xlu0 %v735
        %v737 = vpop.xlane.xlu0 %736
        %v738 = vsel %vm728, %v727, -inf
        %739 = vmax.xlane.f32.xlu0 %v738
        %v740 = vpop.xlane.xlu0 %739
        %v741 = vsub.f32 %v724, %v731
        %v742 = vsub.f32 %v725, %v734
        %v743 = vsub.f32 %v726, %v737
        %v744 = vsub.f32 %v727, %v740
        %v745 = vmul.f32 %v741, 1.442695
        %v746 = vpow.pop %v745
        %v747 = vmul.f32 %v742, 1.442695
        %v748 = vpow.pop %v747
        %v749 = vmul.f32 %v743, 1.442695
        %v750 = vpow.pop %v749
        %v751 = vmul.f32 %v744, 1.442695
        %v752 = vpow.pop %v751
        %v753 = vsel %vm728, %v746, 0.0
        %754 = vadd.xlane.f32.xlu0 %v753
        %v755 = vpop.xlane.xlu0 %754
        %v756 = vsel %vm728, %v748, 0.0
        %757 = vadd.xlane.f32.xlu0 %v756
        %v758 = vpop.xlane.xlu0 %757
        %v759 = vsel %vm728, %v750, 0.0
        %760 = vadd.xlane.f32.xlu0 %v759
        %v761 = vpop.xlane.xlu0 %760
        %v762 = vsel %vm728, %v752, 0.0
        %763 = vadd.xlane.f32.xlu0 %v762
        %v764 = vpop.xlane.xlu0 %763
        %v765 = vrcp.pop %v755
        %v766 = vrcp.pop %v758
        %v767 = vrcp.pop %v761
        %v768 = vrcp.pop %v764
        %v769 = vmul.f32 %v746, %v765
        %v770 = vmul.f32 %v748, %v766
        %v771 = vmul.f32 %v750, %v767
        %v772 = vmul.f32 %v752, %v768
        %v773 = vpack.c.bf16 %v769, %v769
        %v774 = vpack.c.bf16 %v770, %v770
        %v775 = vpack.c.bf16 %v771, %v771
        %v776 = vpack.c.bf16 %v772, %v772
        %v777 = vpack.c.bf16 %v589, %v589
        %v778 = vpack.c.bf16 %v591, %v591
        %v779 = vpack.c.bf16 %v594, %v594
        %v780 = vpack.c.bf16 %v596, %v596
        %v781 = vpack.c.bf16 %v599, %v599
        %v782 = vpack.c.bf16 %v601, %v601
        %v783 = vpack.c.bf16 %v604, %v604
        %v784 = vpack.c.bf16 %v606, %v606
        %v787 = vunpack.c.l.b16 %v777
        %v788 = vunpack.c.l.b16 %v778
        %v789 = vpack.c.b16 %v788, %v787
        %v792 = vsel %vm728, %v773, 0
        %794 = vmatpush.bf16.msra.mxu0 0
        %795 = vmatpush.bf16.msra.mxu0 0
        %796 = vmatpush.bf16.msra.mxu0 0
        %797 = vmatpush.bf16.msra.mxu0 0
        %798 = vmatpush.bf16.msra.mxu0 0
        %799 = vmatpush.bf16.msra.mxu0 0
        %800 = vmatpush.bf16.msra.mxu0 0
        %801 = vmatpush.bf16.msra.mxu0 %v789
        %802 = vmatmul.bf16.gmra.mxu0 %v792
        %v803 = vpop.f32.mrf.mxu0
        %v804 = vadd.f32 0.0, %v803
        %v805 = vpop.f32.mrf.mxu0
        %806 = vdwg.mxu0
        %v809 = vunpack.c.l.b16 %v779
        %v810 = vunpack.c.l.b16 %v780
        %v811 = vpack.c.b16 %v810, %v809
        %v814 = vsel %vm728, %v774, 0
        %816 = vmatpush.bf16.msra.mxu0 0
        %817 = vmatpush.bf16.msra.mxu0 0
        %818 = vmatpush.bf16.msra.mxu0 0
        %819 = vmatpush.bf16.msra.mxu0 0
        %820 = vmatpush.bf16.msra.mxu0 0
        %821 = vmatpush.bf16.msra.mxu0 0
        %822 = vmatpush.bf16.msra.mxu0 0
        %823 = vmatpush.bf16.msra.mxu0 %v811
        %824 = vmatmul.bf16.gmra.mxu0 %v814
        %v825 = vpop.f32.mrf.mxu0
        %v826 = vadd.f32 0.0, %v825
        %v827 = vpop.f32.mrf.mxu0
        %828 = vdwg.mxu0
        %v831 = vunpack.c.l.b16 %v781
        %v832 = vunpack.c.l.b16 %v782
        %v833 = vpack.c.b16 %v832, %v831
        %v836 = vsel %vm728, %v775, 0
        %838 = vmatpush.bf16.msra.mxu0 0
        %839 = vmatpush.bf16.msra.mxu0 0
        %840 = vmatpush.bf16.msra.mxu0 0
        %841 = vmatpush.bf16.msra.mxu0 0
        %842 = vmatpush.bf16.msra.mxu0 0
        %843 = vmatpush.bf16.msra.mxu0 0
        %844 = vmatpush.bf16.msra.mxu0 0
        %845 = vmatpush.bf16.msra.mxu0 %v833
        %846 = vmatmul.bf16.gmra.mxu0 %v836
        %v847 = vpop.f32.mrf.mxu0
        %v848 = vadd.f32 0.0, %v847
        %v849 = vpop.f32.mrf.mxu0
        %850 = vdwg.mxu0
        %v853 = vunpack.c.l.b16 %v783
        %v854 = vunpack.c.l.b16 %v784
        %v855 = vpack.c.b16 %v854, %v853
        %v858 = vsel %vm728, %v776, 0
        %860 = vmatpush.bf16.msra.mxu0 0
        %861 = vmatpush.bf16.msra.mxu0 0
        %862 = vmatpush.bf16.msra.mxu0 0
        %863 = vmatpush.bf16.msra.mxu0 0
        %864 = vmatpush.bf16.msra.mxu0 0
        %865 = vmatpush.bf16.msra.mxu0 0
        %866 = vmatpush.bf16.msra.mxu0 0
        %867 = vmatpush.bf16.msra.mxu0 %v855
        %868 = vmatmul.bf16.gmra.mxu0 %v858
        %v869 = vpop.f32.mrf.mxu0
        %v870 = vadd.f32 0.0, %v869
        %v871 = vpop.f32.mrf.mxu0
        %872 = vdwg.mxu0
        %v873 = vmax.f32 %v804, 0.0
        %v874 = vmax.f32 %v826, 0.0
        %v875 = vmax.f32 %v848, 0.0
        %v876 = vmax.f32 %v870, 0.0
        %877 = vst.msk [vmem:[%s417] sm:$0xff] %vm458, %v873
        %878 = vst.msk [vmem:[%s417 + $0x8] sm:$0xff] %vm458, %v874
        %879 = vst.msk [vmem:[%s417 + $0x10] sm:$0xff] %vm458, %v875
        %880 = vst.msk [vmem:[%s417 + $0x18] sm:$0xff] %vm458, %v876
        %s881 = sand.u32 %s215, 1
        %s882 = scalar_lea.sflag [#allocation4], %s881
        %s883 = sand.u32 %s215, 1
        %s884 = smul.addr %s883, 32
        %s885 = scalar_lea.vmem [#allocation11], %s884
        // Predicated region
        $region73: #{tpu_custom_call.1} parent=51 // pred_check
          %p886 = pneg %p225
        $region74: #{tpu_custom_call.1} parent=51 // pred_check_branch
          %888 = sbr.rel (%p886) target = $region76
        $region75: #{tpu_custom_call.1} parent=51 // pred_region
          %s889 = smul.u32 4, %s29
          %891 = vsyncadd %s882, 0
          %s892 = smul.addr %s889, 8
          %s893 = scalar_lea.hbm %s8, %s892
          %s894 = sshll.u32 %s885, 4
          %s895 = int_to_ptr.vmem [resolvable:$true] %s894
          %s896 = sshll.u32 %s893, 4
          %s897 = int_to_ptr.hbm [resolvable:$true] %s896
          %902 = dma.vmem_to_hbm [thread:$0]  %s895, 512, %s897, %s882, 128, 128, 8
        $region76: #{tpu_custom_call.1} parent=51 // pred_fallthru
          _
      $region52: #{tpu_custom_call.1} parent=5 // pred_fallthru
        _
      %p903 = scmp.le.s32.totalorder 2, %s24
      // Predicated region
      $region77: #{tpu_custom_call.1} parent=5 // pred_check
        %p904 = pneg %p903
      $region78: #{tpu_custom_call.1} parent=5 // pred_check_branch
        %906 = sbr.rel (%p904) target = $region80
      $region79: #{tpu_custom_call.1} parent=5 // pred_region
        %s907 = ssub.s32 %s24, 2
        // Predicated region
        $region81: #{tpu_custom_call.1} parent=79 // pred_check
          %p908 = pneg %p231
        $region82: #{tpu_custom_call.1} parent=79 // pred_check_branch
          %910 = sbr.rel (%p908) target = $region84
        $region83: #{tpu_custom_call.1} parent=79 // pred_region
          %s911 = sand.u32 %s216, 1
          %s912 = scalar_lea.sflag [#allocation4], %s911
          %s913 = sand.u32 %s216, 1
          %s914 = smul.addr %s913, 32
          %s915 = scalar_lea.vmem [#allocation11], %s914
          %917 = dma.done %s912, 512
        $region84: #{tpu_custom_call.1} parent=79 // pred_fallthru
          _
      $region80: #{tpu_custom_call.1} parent=5 // pred_fallthru
        _
    $region6: #{tpu_custom_call.1} parent=1 // loop_footer
      %s28 = sadd.s32 1, %s24
    $region7: #{tpu_custom_call.1} parent=1 // loop_footer_branch
      %23 = sbr.rel target = $region3
    $region8: #{tpu_custom_call.1} parent=1 // loop_exit
      _
    %918 = vsyncpa [#allocation3], 1
    %s919 = scalar_lea.sflag [#allocation3], 1
    %920 = vsyncpa %s919, 1
    %921 = vsyncpa [#allocation6], 1
    %s922 = scalar_lea.sflag [#allocation6], 1
    %923 = vsyncpa %s922, 1
    %924 = vsyncpa [#allocation9], 1
    %925 = vsyncpa [#allocation4], 1
    %s926 = scalar_lea.sflag [#allocation4], 1
    %927 = vsyncpa %s926, 1

</llo_original>
